<compile_context>
chip_gen: v7x
topology: tpu7x:2x2x1
jax: 0.10.0
libtpu: 0.0.40
codegen_flags: <defaults>
</compile_context>

<pallas_src>
import jax
import jax.numpy as jnp
from jax.experimental import pallas as pl
from jax.experimental.pallas import tpu as pltpu

LANE = 128            # vreg lane width: pad feature dims to this
SUBLANE = 8           # vreg sublane width: batch tiles are multiples of this
DEFAULT_TILE_B = 256  # one MXU M-pass on v6e/v7x; fine on v5e; fits VMEM easily


def _round_up(x, m):
    return (x + m - 1) // m * m


def qnetwork_kernel(x_ref, w1_ref, b1_ref, w2_ref, b2_ref, w3_ref, b3_ref, out_ref):
    """One batch tile of the 3-layer MLP.

    x_ref : (TILE_B, S)  streamed state tile
    w1    : (S,  H)  b1: (1, H)   -- VMEM-resident (block index pinned to 0)
    w2    : (H,  H)  b2: (1, H)
    w3    : (H,  A)  b3: (1, A)   (H, A already padded to 128 lanes)
    out   : (TILE_B, A)  lane-dense output tile
    """
    x = x_ref[...]
    s = x.shape[1]

    # fc1: K = state_size is tiny, so skip the MXU and do S broadcast
    # multiply-adds on the VPU (exact same math as x @ w1 + b1).
    if s <= 16:
        w1 = w1_ref[...]
        h1 = b1_ref[...] + x[:, 0:1] * w1[0:1, :]
        for k in range(1, s):
            h1 = h1 + x[:, k:k + 1] * w1[k:k + 1, :]
    else:  # general fallback for larger state sizes
        h1 = jnp.dot(x, w1_ref[...], preferred_element_type=jnp.float32) + b1_ref[...]
    h1 = jnp.maximum(h1, 0.0)

    # fc2 + relu (MXU, full 128-lane tiles)
    h2 = jnp.dot(h1, w2_ref[...], preferred_element_type=jnp.float32) + b2_ref[...]
    h2 = jnp.maximum(h2, 0.0)

    # fc3 (no activation); N padded to 128 -> unmasked lane-dense stores.
    q = jnp.dot(h2, w3_ref[...], preferred_element_type=jnp.float32) + b3_ref[...]
    out_ref[...] = q.astype(out_ref.dtype)


def qnetwork_forward(state, params, *, tile_b=DEFAULT_TILE_B):
    """state: (B, state_size) f32. params: w1,b1,w2,b2,w3,b3 with weights stored
    as (in_features, out_features). Returns (B, action_size) f32."""
    w1, b1 = params["w1"], params["b1"]
    w2, b2 = params["w2"], params["b2"]
    w3, b3 = params["w3"], params["b3"]

    state = state.astype(jnp.float32)
    B, S = state.shape
    H = w1.shape[1]
    A = w3.shape[1]

    # Zero-pad feature dims to full 128-lane blocks (exact; wrapper slices off).
    Hp = _round_up(H, LANE)
    Ap = _round_up(A, LANE)
    w1p = jnp.pad(w1.astype(jnp.float32), ((0, 0), (0, Hp - H)))
    b1p = jnp.pad(b1.reshape(1, -1).astype(jnp.float32), ((0, 0), (0, Hp - H)))
    w2p = jnp.pad(w2.astype(jnp.float32), ((0, Hp - H), (0, Hp - H)))
    b2p = jnp.pad(b2.reshape(1, -1).astype(jnp.float32), ((0, 0), (0, Hp - H)))
    w3p = jnp.pad(w3.astype(jnp.float32), ((0, Hp - H), (0, Ap - A)))
    b3p = jnp.pad(b3.reshape(1, -1).astype(jnp.float32), ((0, 0), (0, Ap - A)))

    # Batch tiling: big batches stream TILE_B-row tiles; tiny batches collapse
    # to a single sublane-aligned tile.
    if B <= tile_b:
        tile_b = max(SUBLANE, _round_up(B, SUBLANE))
    Bp = _round_up(B, tile_b)
    xp = jnp.pad(state, ((0, Bp - B), (0, 0)))

    grid = (Bp // tile_b,)
    pinned = lambda i: (0, 0)  # weights/biases: same block every grid step

    out = pl.pallas_call(
        qnetwork_kernel,
        out_shape=jax.ShapeDtypeStruct((Bp, Ap), jnp.float32),
        grid=grid,
        in_specs=[
            pl.BlockSpec((tile_b, S), lambda i: (i, 0)),  # state tile (streamed)
            pl.BlockSpec((S, Hp), pinned),                # w1 (resident)
            pl.BlockSpec((1, Hp), pinned),                # b1
            pl.BlockSpec((Hp, Hp), pinned),               # w2
            pl.BlockSpec((1, Hp), pinned),                # b2
            pl.BlockSpec((Hp, Ap), pinned),               # w3
            pl.BlockSpec((1, Ap), pinned),                # b3
        ],
        out_specs=pl.BlockSpec((tile_b, Ap), lambda i: (i, 0)),
        compiler_params=pltpu.CompilerParams(
            dimension_semantics=("parallel",),            # 2-TC sharding on v7x
        ),
    )(xp, w1p, b1p, w2p, b2p, w3p, b3p)

    return out[:B, :A]


def init_params(key, state_size=2, action_size=5, hidden_size=64):
    """PyTorch-style uniform(-1/sqrt(fan_in), 1/sqrt(fan_in)) init.
    Weights stored as (in_features, out_features)."""
    def linear(k, fan_in, fan_out):
        kw, kb = jax.random.split(k)
        bound = 1.0 / jnp.sqrt(jnp.float32(fan_in))
        w = jax.random.uniform(kw, (fan_in, fan_out), jnp.float32, -bound, bound)
        b = jax.random.uniform(kb, (1, fan_out), jnp.float32, -bound, bound)
        return w, b

    k1, k2, k3 = jax.random.split(key, 3)
    w1, b1 = linear(k1, state_size, hidden_size)
    w2, b2 = linear(k2, hidden_size, hidden_size)
    w3, b3 = linear(k3, hidden_size, action_size)
    return {"w1": w1, "b1": b1, "w2": w2, "b2": b2, "w3": w3, "b3": b3}


if __name__ == "__main__":
    key = jax.random.PRNGKey(0)
    k_params, k_state = jax.random.split(key)

    state_size, action_size, hidden_size = 2, 5, 64
    batch = 2

    params = init_params(k_params, state_size, action_size, hidden_size)
    state = jax.random.normal(k_state, (batch, state_size), jnp.float32)

    q_values = jax.block_until_ready(qnetwork_forward(state, params))

    # Pure-JAX reference of the same math.
    h1 = jnp.maximum(state @ params["w1"] + params["b1"], 0.0)
    h2 = jnp.maximum(h1 @ params["w2"] + params["b2"], 0.0)
    ref = h2 @ params["w3"] + params["b3"]

    assert q_values.shape == (batch, action_size)
    assert jnp.allclose(q_values, ref, atol=1e-5, rtol=1e-5)

    print("KERNEL_OK")
</pallas_src>

<mosaic_0001>
module attributes {stable_mosaic.version = 11 : i64} {
  func.func @qnetwork_kernel(%arg0: i32, %arg1: memref<8x2xf32, #tpu.memory_space<vmem>>, %arg2: memref<2x128xf32, #tpu.memory_space<vmem>>, %arg3: memref<1x128xf32, #tpu.memory_space<vmem>>, %arg4: memref<128x128xf32, #tpu.memory_space<vmem>>, %arg5: memref<1x128xf32, #tpu.memory_space<vmem>>, %arg6: memref<128x128xf32, #tpu.memory_space<vmem>>, %arg7: memref<1x128xf32, #tpu.memory_space<vmem>>, %arg8: memref<8x128xf32, #tpu.memory_space<vmem>>) attributes {dimension_semantics = [#tpu.dimension_semantics<parallel>], iteration_bounds = array<i64: 1>, scalar_prefetch = 0 : i64, scratch_operands = 0 : i64, tpu.core_type = #tpu.core_type<tc>, window_params = [{transform_indices = @transform_0, window_bounds = array<i64: 8, 2>}, {pipeline_mode = #tpu.pipeline_mode<synchronous>, transform_indices = @transform_1, window_bounds = array<i64: 2, 128>}, {pipeline_mode = #tpu.pipeline_mode<synchronous>, transform_indices = @transform_2, window_bounds = array<i64: 1, 128>}, {pipeline_mode = #tpu.pipeline_mode<synchronous>, transform_indices = @transform_3, window_bounds = array<i64: 128, 128>}, {pipeline_mode = #tpu.pipeline_mode<synchronous>, transform_indices = @transform_4, window_bounds = array<i64: 1, 128>}, {pipeline_mode = #tpu.pipeline_mode<synchronous>, transform_indices = @transform_5, window_bounds = array<i64: 128, 128>}, {pipeline_mode = #tpu.pipeline_mode<synchronous>, transform_indices = @transform_6, window_bounds = array<i64: 1, 128>}, {transform_indices = @transform_7, window_bounds = array<i64: 8, 128>}]} {
    %c0 = arith.constant 0 : index
    %c0_0 = arith.constant 0 : index
    %0 = vector.load %arg1[%c0, %c0_0] : memref<8x2xf32, #tpu.memory_space<vmem>>, vector<8x2xf32>
    %c0_1 = arith.constant 0 : index
    %c0_2 = arith.constant 0 : index
    %1 = vector.load %arg2[%c0_1, %c0_2] : memref<2x128xf32, #tpu.memory_space<vmem>>, vector<2x128xf32>
    %c0_3 = arith.constant 0 : index
    %c0_4 = arith.constant 0 : index
    %2 = vector.load %arg3[%c0_3, %c0_4] : memref<1x128xf32, #tpu.memory_space<vmem>>, vector<1x128xf32>
    %3 = vector.extract_strided_slice %0 {offsets = [0, 0], sizes = [8, 1], strides = [1, 1]} : vector<8x2xf32> to vector<8x1xf32>
    %4 = vector.extract_strided_slice %1 {offsets = [0, 0], sizes = [1, 128], strides = [1, 1]} : vector<2x128xf32> to vector<1x128xf32>
    %5 = vector.broadcast %3 : vector<8x1xf32> to vector<8x128xf32>
    %6 = vector.broadcast %4 : vector<1x128xf32> to vector<8x128xf32>
    %7 = arith.mulf %5, %6 : vector<8x128xf32>
    %8 = vector.broadcast %2 : vector<1x128xf32> to vector<8x128xf32>
    %9 = arith.addf %8, %7 : vector<8x128xf32>
    %10 = vector.extract_strided_slice %0 {offsets = [0, 1], sizes = [8, 1], strides = [1, 1]} : vector<8x2xf32> to vector<8x1xf32>
    %11 = vector.extract_strided_slice %1 {offsets = [1, 0], sizes = [1, 128], strides = [1, 1]} : vector<2x128xf32> to vector<1x128xf32>
    %12 = vector.broadcast %10 : vector<8x1xf32> to vector<8x128xf32>
    %13 = vector.broadcast %11 : vector<1x128xf32> to vector<8x128xf32>
    %14 = arith.mulf %12, %13 : vector<8x128xf32>
    %15 = arith.addf %9, %14 : vector<8x128xf32>
    %cst = arith.constant 0.000000e+00 : f32
    %16 = vector.broadcast %cst : f32 to vector<8x128xf32>
    %17 = arith.maximumf %15, %16 : vector<8x128xf32>
    %c0_5 = arith.constant 0 : index
    %c0_6 = arith.constant 0 : index
    %18 = vector.load %arg4[%c0_5, %c0_6] : memref<128x128xf32, #tpu.memory_space<vmem>>, vector<128x128xf32>
    %cst_7 = arith.constant dense<0.000000e+00> : vector<8x128xf32>
    %19 = tpu.matmul %17, %18, %cst_7 {dimension_numbers = #tpu.dot_dimension_numbers<[1], [0], [0], [1], [0, 0, 1, 1], [], []>} : vector<8x128xf32>, vector<128x128xf32>, vector<8x128xf32> -> vector<8x128xf32>
    %c0_8 = arith.constant 0 : index
    %c0_9 = arith.constant 0 : index
    %20 = vector.load %arg5[%c0_8, %c0_9] : memref<1x128xf32, #tpu.memory_space<vmem>>, vector<1x128xf32>
    %21 = vector.broadcast %20 : vector<1x128xf32> to vector<8x128xf32>
    %22 = arith.addf %19, %21 : vector<8x128xf32>
    %cst_10 = arith.constant 0.000000e+00 : f32
    %23 = vector.broadcast %cst_10 : f32 to vector<8x128xf32>
    %24 = arith.maximumf %22, %23 : vector<8x128xf32>
    %c0_11 = arith.constant 0 : index
    %c0_12 = arith.constant 0 : index
    %25 = vector.load %arg6[%c0_11, %c0_12] : memref<128x128xf32, #tpu.memory_space<vmem>>, vector<128x128xf32>
    %cst_13 = arith.constant dense<0.000000e+00> : vector<8x128xf32>
    %26 = tpu.matmul %24, %25, %cst_13 {dimension_numbers = #tpu.dot_dimension_numbers<[1], [0], [0], [1], [0, 0, 1, 1], [], []>} : vector<8x128xf32>, vector<128x128xf32>, vector<8x128xf32> -> vector<8x128xf32>
    %c0_14 = arith.constant 0 : index
    %c0_15 = arith.constant 0 : index
    %27 = vector.load %arg7[%c0_14, %c0_15] : memref<1x128xf32, #tpu.memory_space<vmem>>, vector<1x128xf32>
    %28 = vector.broadcast %27 : vector<1x128xf32> to vector<8x128xf32>
    %29 = arith.addf %26, %28 : vector<8x128xf32>
    %c0_16 = arith.constant 0 : index
    %c0_17 = arith.constant 0 : index
    %30 = vector.load %arg8[%c0_16, %c0_17] : memref<8x128xf32, #tpu.memory_space<vmem>>, vector<8x128xf32>
    tpu.vector_store %arg8[%c0_16, %c0_17], %29 {strides = array<i32>} : memref<8x128xf32, #tpu.memory_space<vmem>>, vector<8x128xf32>,
    return
  }
  func.func @transform_0(%arg0: i32) -> (i32, i32) {
    %c0_i32 = arith.constant 0 : i32
    %c0_i32_0 = arith.constant 0 : i32
    return %arg0, %c0_i32 : i32, i32
  }
  func.func @transform_1(%arg0: i32) -> (i32, i32) {
    %c0_i32 = arith.constant 0 : i32
    %c0_i32_0 = arith.constant 0 : i32
    %c0_i32_1 = arith.constant 0 : i32
    return %c0_i32, %c0_i32_0 : i32, i32
  }
  func.func @transform_2(%arg0: i32) -> (i32, i32) {
    %c0_i32 = arith.constant 0 : i32
    %c0_i32_0 = arith.constant 0 : i32
    %c0_i32_1 = arith.constant 0 : i32
    return %c0_i32, %c0_i32_0 : i32, i32
  }
  func.func @transform_3(%arg0: i32) -> (i32, i32) {
    %c0_i32 = arith.constant 0 : i32
    %c0_i32_0 = arith.constant 0 : i32
    %c0_i32_1 = arith.constant 0 : i32
    return %c0_i32, %c0_i32_0 : i32, i32
  }
  func.func @transform_4(%arg0: i32) -> (i32, i32) {
    %c0_i32 = arith.constant 0 : i32
    %c0_i32_0 = arith.constant 0 : i32
    %c0_i32_1 = arith.constant 0 : i32
    return %c0_i32, %c0_i32_0 : i32, i32
  }
  func.func @transform_5(%arg0: i32) -> (i32, i32) {
    %c0_i32 = arith.constant 0 : i32
    %c0_i32_0 = arith.constant 0 : i32
    %c0_i32_1 = arith.constant 0 : i32
    return %c0_i32, %c0_i32_0 : i32, i32
  }
  func.func @transform_6(%arg0: i32) -> (i32, i32) {
    %c0_i32 = arith.constant 0 : i32
    %c0_i32_0 = arith.constant 0 : i32
    %c0_i32_1 = arith.constant 0 : i32
    return %c0_i32, %c0_i32_0 : i32, i32
  }
  func.func @transform_7(%arg0: i32) -> (i32, i32) {
    %c0_i32 = arith.constant 0 : i32
    %c0_i32_0 = arith.constant 0 : i32
    return %arg0, %c0_i32 : i32, i32
  }
}

</mosaic_0001>

<llo_original>
// kernel: tpu_custom_call.1
$region0: #{tpu_custom_call.1}
  #allocation0 [shape = 'u32[]', space=smem, size = 0x4, offset = 0x4, fixed_abs, tag = 'smem constant byte address 0x4 - core index']
  #allocation1 [shape = 'u32[144,128]{1,0:T(1,128)}', space=vmem, size = 0x12000, scoped, tag = 'internal scratch']
  %s0 = inlined_call_operand.vmem [shape: f32[8,2], index: 0, kind: input, shape index: {}]
  %s1 = inlined_call_operand.vmem [shape: f32[2,128], index: 1, kind: input, shape index: {}]
  %s2 = inlined_call_operand.vmem [shape: f32[1,128], index: 2, kind: input, shape index: {}]
  %s3 = inlined_call_operand.hbm [shape: f32[128,128], index: 3, kind: input, shape index: {}]
  %s4 = inlined_call_operand.vmem [shape: f32[1,128], index: 4, kind: input, shape index: {}]
  %s5 = inlined_call_operand.hbm [shape: f32[128,128], index: 5, kind: input, shape index: {}]
  %s6 = inlined_call_operand.vmem [shape: f32[1,128], index: 6, kind: input, shape index: {}]
  %s7 = inlined_call_operand.hbm [shape: f32[8,128], index: 7, kind: output, shape index: {}]
  %s8 = sld [smem:[#allocation0]]
  $region46: #{tpu_custom_call.1} parent=0
    _
  %s10 = ssub.s32 1, %s8
  %s11 = scalar_select 0, %s10, %s8
  $region1: #{tpu_custom_call.1} parent=0
    #allocation2 [shape = 'u8[65536]{0}', space=vmem, size = 0x10000, scoped, tag = 'input window, operand 3, single buffered']
    #allocation3 [shape = 's32[1]{0}', space=sflag, size = 0x4, scoped, tag = 'scoped memory for tpu_custom_call.1']
    #allocation4 [shape = 's32[1]{0}', space=sflag, size = 0x4, scoped, tag = 'scoped memory for tpu_custom_call.1']
    #allocation5 [shape = 'u8[65536]{0}', space=vmem, size = 0x10000, scoped, tag = 'input window, operand 5, single buffered']
    #allocation6 [shape = 's32[1]{0}', space=sflag, size = 0x4, scoped, tag = 'scoped memory for tpu_custom_call.1']
    #allocation7 [shape = 'u8[4096]{0}', space=vmem, size = 0x1000, scoped, tag = 'output window, operand 0, single buffered']
    %12 = vsyncpa [#allocation3], 0
    %13 = vsyncpa [#allocation6], 0
    %14 = vsyncpa [#allocation4], 0
    // Predicated region
    $region2: #{tpu_custom_call.1} parent=1 // pred_check
      _
    $region3: #{tpu_custom_call.1} parent=1 // pred_check_branch
      %16 = sbr.rel (0) target = $region5
    $region4: #{tpu_custom_call.1} parent=1 // pred_region
      _
    $region5: #{tpu_custom_call.1} parent=1 // pred_fallthru
      _
    // Predicated region
    $region6: #{tpu_custom_call.1} parent=1 // pred_check
      _
    $region7: #{tpu_custom_call.1} parent=1 // pred_check_branch
      %18 = sbr.rel (0) target = $region9
    $region8: #{tpu_custom_call.1} parent=1 // pred_region
      _
    $region9: #{tpu_custom_call.1} parent=1 // pred_fallthru
      _
    // Predicated region
    $region10: #{tpu_custom_call.1} parent=1 // pred_check
      _
    $region11: #{tpu_custom_call.1} parent=1 // pred_check_branch
      %20 = sbr.rel (0) target = $region13
    $region12: #{tpu_custom_call.1} parent=1 // pred_region
      _
    $region13: #{tpu_custom_call.1} parent=1 // pred_fallthru
      _
    // Predicated region
    $region14: #{tpu_custom_call.1} parent=1 // pred_check
      _
    $region15: #{tpu_custom_call.1} parent=1 // pred_check_branch
      %22 = sbr.rel (0) target = $region17
    $region16: #{tpu_custom_call.1} parent=1 // pred_region
      %s24 = ssub.s32 2048, 2048
      %25 = vsyncadd [#allocation3], %s24
      %s26 = sshll.u32 [#allocation2], 4
      %s27 = int_to_ptr.vmem [resolvable:$true] %s26
      %32 = dma.hbm_to_vmem [thread:$0]  %s3, 2048, %s27, [#allocation3], 128, 128, 8
    $region17: #{tpu_custom_call.1} parent=1 // pred_fallthru
      _
    // Predicated region
    $region18: #{tpu_custom_call.1} parent=1 // pred_check
      _
    $region19: #{tpu_custom_call.1} parent=1 // pred_check_branch
      %34 = sbr.rel (0) target = $region21
    $region20: #{tpu_custom_call.1} parent=1 // pred_region
      _
    $region21: #{tpu_custom_call.1} parent=1 // pred_fallthru
      _
    // Predicated region
    $region22: #{tpu_custom_call.1} parent=1 // pred_check
      _
    $region23: #{tpu_custom_call.1} parent=1 // pred_check_branch
      %36 = sbr.rel (0) target = $region25
    $region24: #{tpu_custom_call.1} parent=1 // pred_region
      %s38 = ssub.s32 2048, 2048
      %39 = vsyncadd [#allocation6], %s38
      %s40 = sshll.u32 [#allocation5], 4
      %s41 = int_to_ptr.vmem [resolvable:$true] %s40
      %46 = dma.hbm_to_vmem [thread:$0]  %s5, 2048, %s41, [#allocation6], 128, 128, 8
    $region25: #{tpu_custom_call.1} parent=1 // pred_fallthru
      _
    // Predicated region
    $region26: #{tpu_custom_call.1} parent=1 // pred_check
      _
    $region27: #{tpu_custom_call.1} parent=1 // pred_check_branch
      %48 = sbr.rel (0) target = $region29
    $region28: #{tpu_custom_call.1} parent=1 // pred_region
      _
    $region29: #{tpu_custom_call.1} parent=1 // pred_fallthru
      _
    // Predicated region
    $region30: #{tpu_custom_call.1} parent=1 // pred_check
      _
    $region31: #{tpu_custom_call.1} parent=1 // pred_check_branch
      %50 = sbr.rel (0) target = $region33
    $region32: #{tpu_custom_call.1} parent=1 // pred_region
      %51 = dma.done [#allocation3], 2048
    $region33: #{tpu_custom_call.1} parent=1 // pred_fallthru
      _
    // Predicated region
    $region34: #{tpu_custom_call.1} parent=1 // pred_check
      _
    $region35: #{tpu_custom_call.1} parent=1 // pred_check_branch
      %53 = sbr.rel (0) target = $region37
    $region36: #{tpu_custom_call.1} parent=1 // pred_region
      %54 = dma.done [#allocation6], 2048
    $region37: #{tpu_custom_call.1} parent=1 // pred_fallthru
      _
    %v55 = vld [vmem:[%s0] sm:$0xff]
    %v56 = vld [vmem:[%s1] sm:$0x3]
    %v57 = vld [vmem:[%s2] sm:$0x1]
    %59 = vset.pattern.permute.xlu0 0
    %60 = vperm.xlu0 %59, %v55
    %v61 = vpop.permute.xlu0 %60
    %v63 = vlaneseq
    %v64 = vshrl.u32 %v63, 7
    %v65 = vsub.s32 0, %v64
    %v66 = vrot.slane %v56, %v65
    %v67 = vmul.f32 %v61, %v66
    %v69 = vlaneseq
    %v70 = vshrl.u32 %v69, 7
    %v71 = vsub.s32 0, %v70
    %v72 = vrot.slane %v57, %v71
    %v74 = vadd.f32 %v72, %v67
    %75 = vset.pattern.permute.xlu0 1
    %76 = vperm.xlu0 %75, %v55
    %v77 = vpop.permute.xlu0 %76
    %v79 = vlaneseq
    %v80 = vshrl.u32 %v79, 7
    %v81 = vsub.s32 1, %v80
    %v82 = vrot.slane %v56, %v81
    %v83 = vmul.f32 %v77, %v82
    %v84 = vadd.f32 %v74, %v83
    %v85 = vmax.f32 %v84, 0.0
    %v86 = vld [vmem:[#allocation2] sm:$0xff]
    %v87 = vld [vmem:[#allocation2 + $0x8] sm:$0xff]
    %v88 = vld [vmem:[#allocation2 + $0x10] sm:$0xff]
    %v89 = vld [vmem:[#allocation2 + $0x18] sm:$0xff]
    %v90 = vld [vmem:[#allocation2 + $0x20] sm:$0xff]
    %v91 = vld [vmem:[#allocation2 + $0x28] sm:$0xff]
    %v92 = vld [vmem:[#allocation2 + $0x30] sm:$0xff]
    %v93 = vld [vmem:[#allocation2 + $0x38] sm:$0xff]
    %v94 = vld [vmem:[#allocation2 + $0x40] sm:$0xff]
    %v95 = vld [vmem:[#allocation2 + $0x48] sm:$0xff]
    %v96 = vld [vmem:[#allocation2 + $0x50] sm:$0xff]
    %v97 = vld [vmem:[#allocation2 + $0x58] sm:$0xff]
    %v98 = vld [vmem:[#allocation2 + $0x60] sm:$0xff]
    %v99 = vld [vmem:[#allocation2 + $0x68] sm:$0xff]
    %v100 = vld [vmem:[#allocation2 + $0x70] sm:$0xff]
    %v101 = vld [vmem:[#allocation2 + $0x78] sm:$0xff]
    %v102 = vld [vmem:[%s4] sm:$0x1]
    %v104 = vlaneseq
    %v105 = vshrl.u32 %v104, 7
    %v106 = vsub.s32 0, %v105
    %v107 = vrot.slane %v102, %v106
    %109 = vmatprep.subr.mxu0 0.0
    %110 = vmatpush1.msra.mxu0 %v86
    %111 = vmatprep.subr.mxu0 0.0
    %112 = vmatpush1.msra.mxu0 %v87
    %113 = vmatprep.subr.mxu0 0.0
    %114 = vmatpush1.msra.mxu0 %v88
    %115 = vmatprep.subr.mxu0 0.0
    %116 = vmatpush1.msra.mxu0 %v89
    %117 = vmatprep.subr.mxu0 0.0
    %118 = vmatpush1.msra.mxu0 %v90
    %119 = vmatprep.subr.mxu0 0.0
    %120 = vmatpush1.msra.mxu0 %v91
    %121 = vmatprep.subr.mxu0 0.0
    %122 = vmatpush1.msra.mxu0 %v92
    %123 = vmatprep.subr.mxu0 0.0
    %124 = vmatpush1.msra.mxu0 %v93
    %125 = vmatprep.subr.mxu0 0.0
    %126 = vmatpush1.msra.mxu0 %v94
    %127 = vmatprep.subr.mxu0 0.0
    %128 = vmatpush1.msra.mxu0 %v95
    %129 = vmatprep.subr.mxu0 0.0
    %130 = vmatpush1.msra.mxu0 %v96
    %131 = vmatprep.subr.mxu0 0.0
    %132 = vmatpush1.msra.mxu0 %v97
    %133 = vmatprep.subr.mxu0 0.0
    %134 = vmatpush1.msra.mxu0 %v98
    %135 = vmatprep.subr.mxu0 0.0
    %136 = vmatpush1.msra.mxu0 %v99
    %137 = vmatprep.subr.mxu0 0.0
    %138 = vmatpush1.msra.mxu0 %v100
    %139 = vmatprep.subr.mxu0 0.0
    %140 = vmatpush1.msra.mxu0 %v101
    %141 = vmatprep.subr.mxu0 0.0
    %142 = vmatpush1.msra.mxu0 0.0
    %143 = vmatprep.subr.mxu0 0.0
    %144 = vmatpush1.msra.mxu0 0.0
    %145 = vmatprep.subr.mxu0 0.0
    %146 = vmatpush1.msra.mxu0 0.0
    %147 = vmatprep.subr.mxu0 0.0
    %148 = vmatpush1.msra.mxu0 0.0
    %149 = vmatprep.subr.mxu0 0.0
    %150 = vmatpush1.msra.mxu0 0.0
    %151 = vmatprep.subr.mxu0 0.0
    %152 = vmatpush1.msra.mxu0 0.0
    %153 = vmatprep.subr.mxu0 0.0
    %154 = vmatpush1.msra.mxu0 0.0
    %155 = vmatprep.subr.mxu0 0.0
    %156 = vmatpush1.msra.mxu0 0.0
    %157 = vmatprep.subr.mxu0 0.0
    %158 = vmatpush1.msra.mxu0 0.0
    %159 = vmatprep.subr.mxu0 0.0
    %160 = vmatpush1.msra.mxu0 0.0
    %161 = vmatprep.subr.mxu0 0.0
    %162 = vmatpush1.msra.mxu0 0.0
    %163 = vmatprep.subr.mxu0 0.0
    %164 = vmatpush1.msra.mxu0 0.0
    %165 = vmatprep.subr.mxu0 0.0
    %166 = vmatpush1.msra.mxu0 0.0
    %167 = vmatprep.subr.mxu0 0.0
    %168 = vmatpush1.msra.mxu0 0.0
    %169 = vmatprep.subr.mxu0 0.0
    %170 = vmatpush1.msra.mxu0 0.0
    %171 = vmatprep.subr.mxu0 0.0
    %172 = vmatpush1.msra.mxu0 0.0
    %173 = vmatprep.mubr.f32.mxu0 0.0
    %174 = vmatmul.mubr.f32.gmra.mrb[0].mxu0 %v85
    %v175 = vpop.f32.mrb[0].mxu0
    %v176 = vadd.f32 %v107, %v175
    %v177 = vpop.f32.mrb[0].mxu0
    %178 = vdwg.mxu0
    %v179 = vmax.f32 %v176, 0.0
    %v180 = vld [vmem:[#allocation5] sm:$0xff]
    %v181 = vld [vmem:[#allocation5 + $0x8] sm:$0xff]
    %v182 = vld [vmem:[#allocation5 + $0x10] sm:$0xff]
    %v183 = vld [vmem:[#allocation5 + $0x18] sm:$0xff]
    %v184 = vld [vmem:[#allocation5 + $0x20] sm:$0xff]
    %v185 = vld [vmem:[#allocation5 + $0x28] sm:$0xff]
    %v186 = vld [vmem:[#allocation5 + $0x30] sm:$0xff]
    %v187 = vld [vmem:[#allocation5 + $0x38] sm:$0xff]
    %v188 = vld [vmem:[#allocation5 + $0x40] sm:$0xff]
    %v189 = vld [vmem:[#allocation5 + $0x48] sm:$0xff]
    %v190 = vld [vmem:[#allocation5 + $0x50] sm:$0xff]
    %v191 = vld [vmem:[#allocation5 + $0x58] sm:$0xff]
    %v192 = vld [vmem:[#allocation5 + $0x60] sm:$0xff]
    %v193 = vld [vmem:[#allocation5 + $0x68] sm:$0xff]
    %v194 = vld [vmem:[#allocation5 + $0x70] sm:$0xff]
    %v195 = vld [vmem:[#allocation5 + $0x78] sm:$0xff]
    %v196 = vld [vmem:[%s6] sm:$0x1]
    %v198 = vlaneseq
    %v199 = vshrl.u32 %v198, 7
    %v200 = vsub.s32 0, %v199
    %v201 = vrot.slane %v196, %v200
    %203 = vmatprep.subr.mxu0 0.0
    %204 = vmatpush1.msra.mxu0 %v180
    %205 = vmatprep.subr.mxu0 0.0
    %206 = vmatpush1.msra.mxu0 %v181
    %207 = vmatprep.subr.mxu0 0.0
    %208 = vmatpush1.msra.mxu0 %v182
    %209 = vmatprep.subr.mxu0 0.0
    %210 = vmatpush1.msra.mxu0 %v183
    %211 = vmatprep.subr.mxu0 0.0
    %212 = vmatpush1.msra.mxu0 %v184
    %213 = vmatprep.subr.mxu0 0.0
    %214 = vmatpush1.msra.mxu0 %v185
    %215 = vmatprep.subr.mxu0 0.0
    %216 = vmatpush1.msra.mxu0 %v186
    %217 = vmatprep.subr.mxu0 0.0
    %218 = vmatpush1.msra.mxu0 %v187
    %219 = vmatprep.subr.mxu0 0.0
    %220 = vmatpush1.msra.mxu0 %v188
    %221 = vmatprep.subr.mxu0 0.0
    %222 = vmatpush1.msra.mxu0 %v189
    %223 = vmatprep.subr.mxu0 0.0
    %224 = vmatpush1.msra.mxu0 %v190
    %225 = vmatprep.subr.mxu0 0.0
    %226 = vmatpush1.msra.mxu0 %v191
    %227 = vmatprep.subr.mxu0 0.0
    %228 = vmatpush1.msra.mxu0 %v192
    %229 = vmatprep.subr.mxu0 0.0
    %230 = vmatpush1.msra.mxu0 %v193
    %231 = vmatprep.subr.mxu0 0.0
    %232 = vmatpush1.msra.mxu0 %v194
    %233 = vmatprep.subr.mxu0 0.0
    %234 = vmatpush1.msra.mxu0 %v195
    %235 = vmatprep.subr.mxu0 0.0
    %236 = vmatpush1.msra.mxu0 0.0
    %237 = vmatprep.subr.mxu0 0.0
    %238 = vmatpush1.msra.mxu0 0.0
    %239 = vmatprep.subr.mxu0 0.0
    %240 = vmatpush1.msra.mxu0 0.0
    %241 = vmatprep.subr.mxu0 0.0
    %242 = vmatpush1.msra.mxu0 0.0
    %243 = vmatprep.subr.mxu0 0.0
    %244 = vmatpush1.msra.mxu0 0.0
    %245 = vmatprep.subr.mxu0 0.0
    %246 = vmatpush1.msra.mxu0 0.0
    %247 = vmatprep.subr.mxu0 0.0
    %248 = vmatpush1.msra.mxu0 0.0
    %249 = vmatprep.subr.mxu0 0.0
    %250 = vmatpush1.msra.mxu0 0.0
    %251 = vmatprep.subr.mxu0 0.0
    %252 = vmatpush1.msra.mxu0 0.0
    %253 = vmatprep.subr.mxu0 0.0
    %254 = vmatpush1.msra.mxu0 0.0
    %255 = vmatprep.subr.mxu0 0.0
    %256 = vmatpush1.msra.mxu0 0.0
    %257 = vmatprep.subr.mxu0 0.0
    %258 = vmatpush1.msra.mxu0 0.0
    %259 = vmatprep.subr.mxu0 0.0
    %260 = vmatpush1.msra.mxu0 0.0
    %261 = vmatprep.subr.mxu0 0.0
    %262 = vmatpush1.msra.mxu0 0.0
    %263 = vmatprep.subr.mxu0 0.0
    %264 = vmatpush1.msra.mxu0 0.0
    %265 = vmatprep.subr.mxu0 0.0
    %266 = vmatpush1.msra.mxu0 0.0
    %267 = vmatprep.mubr.f32.mxu0 0.0
    %268 = vmatmul.mubr.f32.gmra.mrb[0].mxu0 %v179
    %v269 = vpop.f32.mrb[0].mxu0
    %v270 = vadd.f32 %v201, %v269
    %v271 = vpop.f32.mrb[0].mxu0
    %272 = vdwg.mxu0
    %273 = vst [vmem:[#allocation7] sm:$0xff] %v270
    // Predicated region
    $region38: #{tpu_custom_call.1} parent=1 // pred_check
      _
    $region39: #{tpu_custom_call.1} parent=1 // pred_check_branch
      %275 = sbr.rel (0) target = $region41
    $region40: #{tpu_custom_call.1} parent=1 // pred_region
      %s277 = ssub.s32 128, 128
      %278 = vsyncadd [#allocation4], %s277
      %s280 = sshll.u32 [#allocation7], 4
      %s281 = int_to_ptr.vmem [resolvable:$true] %s280
      %283 = dma.vmem_to_hbm [thread:$0]  %s281, 128, %s7, [#allocation4]
    $region41: #{tpu_custom_call.1} parent=1 // pred_fallthru
      _
    // Predicated region
    $region42: #{tpu_custom_call.1} parent=1 // pred_check
      _
    $region43: #{tpu_custom_call.1} parent=1 // pred_check_branch
      %285 = sbr.rel (0) target = $region45
    $region44: #{tpu_custom_call.1} parent=1 // pred_region
      %286 = dma.done [#allocation4], 128
    $region45: #{tpu_custom_call.1} parent=1 // pred_fallthru
      _
    %287 = vsyncpa [#allocation3], 1
    %288 = vsyncpa [#allocation6], 1
    %289 = vsyncpa [#allocation4], 1

</llo_original>
